<compile_context>
chip_gen: v6e
topology: v6e:2x2x1
jax: 0.10.0
libtpu: 0.0.40
codegen_flags: <defaults>
</compile_context>

<pallas_src>
import jax
import jax.numpy as jnp
from jax.experimental import pallas as pl
from jax.experimental.pallas import tpu as pltpu

BN_EPS = 1e-5  # torch.nn.BatchNorm2d default eps
DEFAULT_VMEM_BUDGET = 28 * 1024 * 1024  # below the 32 MiB default scoped limit everywhere


def tst_kernel(x_ref, scale_ref, shift_ref, w_ref, b_ref, out_ref):
    # x_ref:     (TILE_N, C, HW)  activations, any float dtype (upcast here)
    # scale_ref: (C, 1)           gamma * rsqrt(var + eps)
    # shift_ref: (C, 1)           beta - mean * scale
    # w_ref:     (C, Kp)          folded (w1 @ w2) / HW, zero-padded to Kp
    # b_ref:     (1, Kp)          folded (b1 @ w2 + b2), zero-padded to Kp
    # out_ref:   (TILE_N, Kp)
    x = x_ref[...].astype(jnp.float32)                       # (TILE_N, C, HW)

    # eval-mode BN + ReLU (scale/shift broadcast over batch and HW lanes)
    xr = jnp.maximum(x * scale_ref[...] + shift_ref[...], 0.0)

    # global sum-pool over spatial (lane) axis -> XLU cross-lane reduce.
    # 1/HW is folded into w_ref, so a plain sum suffices.
    pooled = jnp.sum(xr, axis=-1)                             # (TILE_N, C)

    # single fused linear (head + label decoder + 1/HW folded in the wrapper)
    out_ref[...] = (
        jnp.dot(pooled, w_ref[...], preferred_element_type=jnp.float32)
        + b_ref[...]
    )


def _choose_tile_n(n, bytes_per_row, vmem_budget_bytes):
    """Largest batch tile (multiple of 8, <=256) whose double-buffered x block
    fits the VMEM budget; prefers a divisor of n (no pad copy) and >=2 tiles."""
    rows_budget = max(8, int(vmem_budget_bytes // max(1, 2 * bytes_per_row)))
    tile = min(256, rows_budget, max(n, 8))
    tile = max(8, (tile // 8) * 8)
    # at least 2 grid steps when the batch allows (v7x megacore sharding)
    if n > 8 and -(-n // tile) < 2:
        tile = max(8, ((n // 2) // 8) * 8)
    # prefer a tile that divides n exactly (avoids an HBM pad copy of x)
    for t in range(tile, 7, -8):
        if n % t == 0:
            return t
    # fallback: balance the tiles to minimize padding
    n_tiles = -(-n // tile)
    per_tile = -(-n // n_tiles)
    return max(8, -(-per_tile // 8) * 8)


def tst_forward(x_nchw, params, *, vmem_budget_bytes=DEFAULT_VMEM_BUDGET):
    """Fused TST forward (eval mode). Returns logits of shape (N, num_classes)."""
    N, C, H, W = x_nchw.shape
    HW = H * W
    K = params["w2"].shape[1]
    Kp = pl.cdiv(K, 128) * 128                   # lane-dense padded output width

    # ---- wrapper-side parameter prep (tiny, once per call) -------------------
    gamma = params["gamma"].reshape(-1).astype(jnp.float32)
    beta = params["beta"].reshape(-1).astype(jnp.float32)
    mean = params["mean"].reshape(-1).astype(jnp.float32)
    var = params["var"].reshape(-1).astype(jnp.float32)
    scale1 = gamma * jax.lax.rsqrt(var + BN_EPS)              # (C,)
    shift1 = beta - mean * scale1                             # (C,)
    scale = scale1.reshape(C, 1)
    shift = shift1.reshape(C, 1)

    # fold the two linears (no nonlinearity between them) AND the 1/HW pool factor
    w1 = params["w1"].astype(jnp.float32)                     # (C, L)
    b1 = params["b1"].astype(jnp.float32)                     # (1, L)
    w2 = params["w2"].astype(jnp.float32)                     # (L, K)
    b2 = params["b2"].astype(jnp.float32)                     # (1, K)
    w_fold = (w1 @ w2) * (1.0 / HW)                           # (C, K)
    b_fold = b1 @ w2 + b2                                     # (1, K)
    if Kp != K:
        w_fold = jnp.pad(w_fold, ((0, 0), (0, Kp - K)))
        b_fold = jnp.pad(b_fold, ((0, 0), (0, Kp - K)))

    # ---- activation layout: (N,C,H,W) -> (N,C,HW); trailing-merge reshape is free
    x3 = x_nchw.reshape(N, C, HW)
    x_itemsize = jnp.dtype(x3.dtype).itemsize
    bytes_per_row = C * HW * x_itemsize

    tile_n = _choose_tile_n(N, bytes_per_row, vmem_budget_bytes)
    n_tiles = pl.cdiv(N, tile_n)
    Np = n_tiles * tile_n
    if Np != N:
        # fallback only (tile selection prefers divisors of N); pad is < tile_n rows
        x3 = jnp.pad(x3, ((0, Np - N), (0, 0), (0, 0)))

    # explicit VMEM limit from actual block sizes (double-buffered)
    vmem_need = (
        2 * tile_n * bytes_per_row          # x blocks
        + 2 * tile_n * Kp * 4               # output blocks
        + 2 * (C * Kp + Kp) * 4             # folded W, b
        + 2 * 2 * C * 128 * 4               # BN scale/shift (lane-padded)
    )

    cost = pl.CostEstimate(
        flops=int(4 * Np * C * HW + 2 * Np * C * Kp),
        transcendentals=0,
        bytes_accessed=int(Np * C * HW * x_itemsize + Np * Kp * 4
                           + (C * Kp + Kp + 2 * C) * 4),
    )

    out = pl.pallas_call(
        tst_kernel,
        out_shape=jax.ShapeDtypeStruct((Np, Kp), jnp.float32),
        grid=(n_tiles,),
        in_specs=[
            pl.BlockSpec((tile_n, C, HW), lambda i: (i, 0, 0)),   # x (pipelined)
            pl.BlockSpec((C, 1), lambda i: (0, 0)),               # BN scale
            pl.BlockSpec((C, 1), lambda i: (0, 0)),               # BN shift
            pl.BlockSpec((C, Kp), lambda i: (0, 0)),              # folded W
            pl.BlockSpec((1, Kp), lambda i: (0, 0)),              # folded b
        ],
        out_specs=pl.BlockSpec((tile_n, Kp), lambda i: (i, 0)),
        compiler_params=pltpu.CompilerParams(
            dimension_semantics=("parallel",),
            vmem_limit_bytes=int(vmem_need + (4 << 20)),
        ),
        cost_estimate=cost,
    )(x3, scale, shift, w_fold, b_fold)

    return out[:N, :K]


def tst_reference(x_nchw_f32, params):
    """Pure-JAX reference of the same forward pass (f32 math)."""
    g = params["gamma"][:, 0]
    b = params["beta"][:, 0]
    m = params["mean"][:, 0]
    v = params["var"][:, 0]
    scale = g / jnp.sqrt(v + BN_EPS)
    shift = b - m * scale
    xn = x_nchw_f32 * scale[None, :, None, None] + shift[None, :, None, None]
    xr = jnp.maximum(xn, 0.0)
    pooled = xr.mean(axis=(2, 3))
    z = pooled @ params["w1"] + params["b1"][0]
    y = z @ params["w2"] + params["b2"][0]
    return y


def init_params(key, C, latent_dim, num_classes):
    k1, k2, k3, k4, k5 = jax.random.split(key, 5)
    return {
        # BatchNorm2d params/buffers (deterministic, non-trivial values)
        "gamma": (1.0 + 0.1 * jax.random.normal(k1, (C, 1))).astype(jnp.float32),
        "beta": (0.05 * jax.random.normal(k2, (C, 1))).astype(jnp.float32),
        "mean": (0.1 * jax.random.normal(k3, (C, 1))).astype(jnp.float32),
        "var": (1.0 + 0.1 * jnp.abs(jax.random.normal(k4, (C, 1)))).astype(jnp.float32),
        # head Linear(C -> latent_dim), stored pre-transposed (C, L)
        "w1": (0.1 * jax.random.normal(k5, (C, latent_dim))).astype(jnp.float32),
        "b1": jnp.linspace(-0.1, 0.1, latent_dim, dtype=jnp.float32).reshape(1, latent_dim),
        # decoder Linear(latent_dim -> num_classes), stored pre-transposed (L, K)
        "w2": (0.1 * jax.random.normal(jax.random.PRNGKey(42),
                                       (latent_dim, num_classes))).astype(jnp.float32),
        "b2": jnp.linspace(-0.05, 0.05, num_classes, dtype=jnp.float32).reshape(1, num_classes),
    }


if __name__ == "__main__":
    # Small deterministic example shapes (2 batch tiles of 8 -> both v7x TCs used).
    N, C, H, W = 16, 16, 8, 8
    latent_dim, num_classes = 32, 10

    key = jax.random.PRNGKey(0)
    kx, kp = jax.random.split(key)
    # "Producer" emits bf16 activations: halves the dominant HBM stream the
    # kernel reads; no extra cast/transpose pass is done in the wrapper.
    x = jax.random.normal(kx, (N, C, H, W), dtype=jnp.float32).astype(jnp.bfloat16)
    params = init_params(kp, C, latent_dim, num_classes)

    y = tst_forward(x, params)
    y = jax.block_until_ready(y)

    # reference sees the exact same (bf16-quantized) input values, f32 math
    y_ref = tst_reference(x.astype(jnp.float32), params)
    assert y.shape == (N, num_classes)
    assert jnp.allclose(y, y_ref, atol=1e-4, rtol=1e-4), "mismatch vs JAX reference"

    print("KERNEL_OK")
</pallas_src>

<mosaic_0001>
module attributes {stable_mosaic.version = 11 : i64} {
  func.func @tst_kernel(%arg0: i32, %arg1: memref<8x16x64xbf16, #tpu.memory_space<vmem>>, %arg2: memref<16x1xf32, #tpu.memory_space<vmem>>, %arg3: memref<16x1xf32, #tpu.memory_space<vmem>>, %arg4: memref<16x128xf32, #tpu.memory_space<vmem>>, %arg5: memref<1x128xf32, #tpu.memory_space<vmem>>, %arg6: memref<8x128xf32, #tpu.memory_space<vmem>>) attributes {dimension_semantics = [#tpu.dimension_semantics<parallel>], iteration_bounds = array<i64: 2>, scalar_prefetch = 0 : i64, scratch_operands = 0 : i64, tpu.core_type = #tpu.core_type<tc>, window_params = [{transform_indices = @transform_0, window_bounds = array<i64: 8, 16, 64>}, {pipeline_mode = #tpu.pipeline_mode<synchronous>, transform_indices = @transform_1, window_bounds = array<i64: 16, 1>}, {pipeline_mode = #tpu.pipeline_mode<synchronous>, transform_indices = @transform_2, window_bounds = array<i64: 16, 1>}, {pipeline_mode = #tpu.pipeline_mode<synchronous>, transform_indices = @transform_3, window_bounds = array<i64: 16, 128>}, {pipeline_mode = #tpu.pipeline_mode<synchronous>, transform_indices = @transform_4, window_bounds = array<i64: 1, 128>}, {transform_indices = @transform_5, window_bounds = array<i64: 8, 128>}]} {
    %c0 = arith.constant 0 : index
    %c0_0 = arith.constant 0 : index
    %c0_1 = arith.constant 0 : index
    %0 = vector.load %arg1[%c0, %c0_0, %c0_1] : memref<8x16x64xbf16, #tpu.memory_space<vmem>>, vector<8x16x64xbf16>
    %1 = arith.extf %0 : vector<8x16x64xbf16> to vector<8x16x64xf32>
    %c0_2 = arith.constant 0 : index
    %c0_3 = arith.constant 0 : index
    %2 = vector.load %arg2[%c0_2, %c0_3] : memref<16x1xf32, #tpu.memory_space<vmem>>, vector<16x1xf32>
    %3 = vector.shape_cast %2 : vector<16x1xf32> to vector<1x16x1xf32>
    %4 = vector.broadcast %3 : vector<1x16x1xf32> to vector<8x16x64xf32>
    %5 = arith.mulf %1, %4 : vector<8x16x64xf32>
    %c0_4 = arith.constant 0 : index
    %c0_5 = arith.constant 0 : index
    %6 = vector.load %arg3[%c0_4, %c0_5] : memref<16x1xf32, #tpu.memory_space<vmem>>, vector<16x1xf32>
    %7 = vector.shape_cast %6 : vector<16x1xf32> to vector<1x16x1xf32>
    %8 = vector.broadcast %7 : vector<1x16x1xf32> to vector<8x16x64xf32>
    %9 = arith.addf %5, %8 : vector<8x16x64xf32>
    %cst = arith.constant 0.000000e+00 : f32
    %10 = vector.broadcast %cst : f32 to vector<8x16x64xf32>
    %11 = arith.maximumf %9, %10 : vector<8x16x64xf32>
    %cst_6 = arith.constant dense<0.000000e+00> : vector<8x16xf32>
    %12 = vector.multi_reduction <add>, %11, %cst_6 [2] : vector<8x16x64xf32> to vector<8x16xf32>
    %c0_7 = arith.constant 0 : index
    %c0_8 = arith.constant 0 : index
    %13 = vector.load %arg4[%c0_7, %c0_8] : memref<16x128xf32, #tpu.memory_space<vmem>>, vector<16x128xf32>
    %cst_9 = arith.constant dense<0.000000e+00> : vector<8x128xf32>
    %14 = tpu.matmul %12, %13, %cst_9 {dimension_numbers = #tpu.dot_dimension_numbers<[1], [0], [0], [1], [0, 0, 1, 1], [], []>} : vector<8x16xf32>, vector<16x128xf32>, vector<8x128xf32> -> vector<8x128xf32>
    %c0_10 = arith.constant 0 : index
    %c0_11 = arith.constant 0 : index
    %15 = vector.load %arg5[%c0_10, %c0_11] : memref<1x128xf32, #tpu.memory_space<vmem>>, vector<1x128xf32>
    %16 = vector.broadcast %15 : vector<1x128xf32> to vector<8x128xf32>
    %17 = arith.addf %14, %16 : vector<8x128xf32>
    %c0_12 = arith.constant 0 : index
    %c0_13 = arith.constant 0 : index
    %18 = vector.load %arg6[%c0_12, %c0_13] : memref<8x128xf32, #tpu.memory_space<vmem>>, vector<8x128xf32>
    tpu.vector_store %arg6[%c0_12, %c0_13], %17 {strides = array<i32>} : memref<8x128xf32, #tpu.memory_space<vmem>>, vector<8x128xf32>,
    return
  }
  func.func @transform_0(%arg0: i32) -> (i32, i32, i32) {
    %c0_i32 = arith.constant 0 : i32
    %c0_i32_0 = arith.constant 0 : i32
    %c0_i32_1 = arith.constant 0 : i32
    return %arg0, %c0_i32, %c0_i32_0 : i32, i32, i32
  }
  func.func @transform_1(%arg0: i32) -> (i32, i32) {
    %c0_i32 = arith.constant 0 : i32
    %c0_i32_0 = arith.constant 0 : i32
    %c0_i32_1 = arith.constant 0 : i32
    return %c0_i32, %c0_i32_0 : i32, i32
  }
  func.func @transform_2(%arg0: i32) -> (i32, i32) {
    %c0_i32 = arith.constant 0 : i32
    %c0_i32_0 = arith.constant 0 : i32
    %c0_i32_1 = arith.constant 0 : i32
    return %c0_i32, %c0_i32_0 : i32, i32
  }
  func.func @transform_3(%arg0: i32) -> (i32, i32) {
    %c0_i32 = arith.constant 0 : i32
    %c0_i32_0 = arith.constant 0 : i32
    %c0_i32_1 = arith.constant 0 : i32
    return %c0_i32, %c0_i32_0 : i32, i32
  }
  func.func @transform_4(%arg0: i32) -> (i32, i32) {
    %c0_i32 = arith.constant 0 : i32
    %c0_i32_0 = arith.constant 0 : i32
    %c0_i32_1 = arith.constant 0 : i32
    return %c0_i32, %c0_i32_0 : i32, i32
  }
  func.func @transform_5(%arg0: i32) -> (i32, i32) {
    %c0_i32 = arith.constant 0 : i32
    %c0_i32_0 = arith.constant 0 : i32
    return %arg0, %c0_i32 : i32, i32
  }
}

</mosaic_0001>

<llo_original>
// kernel: tpu_custom_call.1
$region0: #{tpu_custom_call.1}
  #allocation0 [shape = 'u32[]', space=smem, size = 0x4, offset = 0x4, fixed_abs, tag = 'smem constant byte address 0x4 - core index']
  #allocation1 [shape = 'u32[144,128]{1,0:T(1,128)}', space=vmem, size = 0x12000, scoped, tag = 'internal scratch']
  %s0 = inlined_call_operand.hbm [shape: bf16[16,16,64], index: 0, kind: input, shape index: {}]
  %s1 = inlined_call_operand.vmem [shape: f32[16,1], index: 1, kind: input, shape index: {}]
  %s2 = inlined_call_operand.vmem [shape: f32[16,1], index: 2, kind: input, shape index: {}]
  %s3 = inlined_call_operand.vmem [shape: f32[16,128], index: 3, kind: input, shape index: {}]
  %s4 = inlined_call_operand.vmem [shape: f32[1,128], index: 4, kind: input, shape index: {}]
  %s5 = inlined_call_operand.hbm [shape: f32[16,128], index: 5, kind: output, shape index: {}]
  %s6 = sld [smem:[#allocation0]]
  $region57: #{tpu_custom_call.1} parent=0
    _
  %s8 = ssub.s32 1, %s6
  %s9 = scalar_select 0, %s8, %s6
  $region1: #{tpu_custom_call.1} parent=0
    #allocation2 [shape = 'u8[65536]{0}', space=vmem, size = 0x10000, scoped, tag = 'input window, operand 0']
    #allocation3 [shape = 's32[2]{0}', space=sflag, size = 0x8, scoped, tag = 'scoped memory for tpu_custom_call.1']
    #allocation4 [shape = 's32[2]{0}', space=sflag, size = 0x8, scoped, tag = 'scoped memory for tpu_custom_call.1']
    #allocation5 [shape = 'u8[8192]{0}', space=vmem, size = 0x2000, scoped, tag = 'output window, operand 0']
    %10 = vsyncpa [#allocation3], 0
    %s11 = scalar_lea.sflag [#allocation3], 1
    %12 = vsyncpa %s11, 0
    %13 = vsyncpa [#allocation4], 0
    %s14 = scalar_lea.sflag [#allocation4], 1
    %15 = vsyncpa %s14, 0
    loop: start=0, step=1, limit=4
    $region2: #{tpu_custom_call.1} parent=1 // loop_pre_header
      _
    $region3: #{tpu_custom_call.1} parent=1 // loop_header
      %s17 = sphi 0, %s21
      %p18 = scmp.ge.s32.totalorder %s17, 4
      %s27 = sphi 0, %s29
      %s30 = sphi 0, %s27
      %s31 = sphi 0, %s30
      %s47 = sphi 0, %s31
      %s51 = sphi 0, %s51
      %s53 = sphi 0, %s51
      %s54 = sphi 0, %s53
      %s68 = sphi 0, %s54
      %s72 = sphi 0, %s72
      %s74 = sphi 0, %s72
      %s75 = sphi 0, %s74
      %s89 = sphi 0, %s75
      %s93 = sphi 0, %s93
      %s95 = sphi 0, %s93
      %s96 = sphi 0, %s95
      %s110 = sphi 0, %s96
      %s114 = sphi 0, %s114
      %s116 = sphi 0, %s114
      %s117 = sphi 0, %s116
      %s131 = sphi 0, %s117
      %s137 = sphi 0, %s139
      %s140 = sphi 0, %s137
      %s141 = sphi 0, %s140
      %s157 = sphi 0, %s141
    $region4: #{tpu_custom_call.1} parent=1 // loop_header_branch
      %20 = sbr.rel (%p18) target = $region8
    $region5: #{tpu_custom_call.1} parent=1 // loop_body
      %s22 = ssub.s32 %s17, 1
      %s23 = ssub.s32 %s17, 2
      %s24 = sadd.s32 %s17, 1
      %s25 = ssub.s32 %s17, %s24
      %p26 = scmp.eq.s32.totalorder %s25, 0
      %s28 = sadd.s32 %s27, 1
      %s29 = scalar_select %p26, %s27, %s28
      %p32 = pneg %p26
      %p33 = scmp.eq.s32.totalorder %s17, 1
      %p34 = por %p32, %p33
      %p35 = scmp.ne.s32.totalorder %s27, %s30
      %p36 = scmp.eq.s32.totalorder %s17, 0
      %p37 = por %p35, %p36
      %p38 = scmp.ne.s32.totalorder %s27, %s30
      %p39 = scmp.eq.s32.totalorder %s22, 1
      %p40 = por %p38, %p39
      %p41 = scmp.ne.s32.totalorder %s30, %s31
      %p42 = scmp.eq.s32.totalorder %s22, 0
      %p43 = por %p41, %p42
      %p44 = scmp.ne.s32.totalorder %s30, %s31
      %p45 = scmp.eq.s32.totalorder %s23, 1
      %p46 = por %p44, %p45
      %p48 = scmp.ne.s32.totalorder %s31, %s47
      %p49 = scmp.eq.s32.totalorder %s23, 0
      %p50 = por %p48, %p49
      %s52 = sadd.s32 %s51, 1
      %p55 = scmp.eq.s32.totalorder %s17, 1
      %p56 = scmp.ne.s32.totalorder %s51, %s53
      %p57 = scmp.eq.s32.totalorder %s17, 0
      %p58 = por %p56, %p57
      %p59 = scmp.ne.s32.totalorder %s51, %s53
      %p60 = scmp.eq.s32.totalorder %s22, 1
      %p61 = por %p59, %p60
      %p62 = scmp.ne.s32.totalorder %s53, %s54
      %p63 = scmp.eq.s32.totalorder %s22, 0
      %p64 = por %p62, %p63
      %p65 = scmp.ne.s32.totalorder %s53, %s54
      %p66 = scmp.eq.s32.totalorder %s23, 1
      %p67 = por %p65, %p66
      %p69 = scmp.ne.s32.totalorder %s54, %s68
      %p70 = scmp.eq.s32.totalorder %s23, 0
      %p71 = por %p69, %p70
      %s73 = sadd.s32 %s72, 1
      %p76 = scmp.eq.s32.totalorder %s17, 1
      %p77 = scmp.ne.s32.totalorder %s72, %s74
      %p78 = scmp.eq.s32.totalorder %s17, 0
      %p79 = por %p77, %p78
      %p80 = scmp.ne.s32.totalorder %s72, %s74
      %p81 = scmp.eq.s32.totalorder %s22, 1
      %p82 = por %p80, %p81
      %p83 = scmp.ne.s32.totalorder %s74, %s75
      %p84 = scmp.eq.s32.totalorder %s22, 0
      %p85 = por %p83, %p84
      %p86 = scmp.ne.s32.totalorder %s74, %s75
      %p87 = scmp.eq.s32.totalorder %s23, 1
      %p88 = por %p86, %p87
      %p90 = scmp.ne.s32.totalorder %s75, %s89
      %p91 = scmp.eq.s32.totalorder %s23, 0
      %p92 = por %p90, %p91
      %s94 = sadd.s32 %s93, 1
      %p97 = scmp.eq.s32.totalorder %s17, 1
      %p98 = scmp.ne.s32.totalorder %s93, %s95
      %p99 = scmp.eq.s32.totalorder %s17, 0
      %p100 = por %p98, %p99
      %p101 = scmp.ne.s32.totalorder %s93, %s95
      %p102 = scmp.eq.s32.totalorder %s22, 1
      %p103 = por %p101, %p102
      %p104 = scmp.ne.s32.totalorder %s95, %s96
      %p105 = scmp.eq.s32.totalorder %s22, 0
      %p106 = por %p104, %p105
      %p107 = scmp.ne.s32.totalorder %s95, %s96
      %p108 = scmp.eq.s32.totalorder %s23, 1
      %p109 = por %p107, %p108
      %p111 = scmp.ne.s32.totalorder %s96, %s110
      %p112 = scmp.eq.s32.totalorder %s23, 0
      %p113 = por %p111, %p112
      %s115 = sadd.s32 %s114, 1
      %p118 = scmp.eq.s32.totalorder %s17, 1
      %p119 = scmp.ne.s32.totalorder %s114, %s116
      %p120 = scmp.eq.s32.totalorder %s17, 0
      %p121 = por %p119, %p120
      %p122 = scmp.ne.s32.totalorder %s114, %s116
      %p123 = scmp.eq.s32.totalorder %s22, 1
      %p124 = por %p122, %p123
      %p125 = scmp.ne.s32.totalorder %s116, %s117
      %p126 = scmp.eq.s32.totalorder %s22, 0
      %p127 = por %p125, %p126
      %p128 = scmp.ne.s32.totalorder %s116, %s117
      %p129 = scmp.eq.s32.totalorder %s23, 1
      %p130 = por %p128, %p129
      %p132 = scmp.ne.s32.totalorder %s117, %s131
      %p133 = scmp.eq.s32.totalorder %s23, 0
      %p134 = por %p132, %p133
      %s135 = ssub.s32 %s17, %s24
      %p136 = scmp.eq.s32.totalorder %s135, 0
      %s138 = sadd.s32 %s137, 1
      %s139 = scalar_select %p136, %s137, %s138
      %p142 = pneg %p136
      %p143 = scmp.eq.s32.totalorder %s17, 1
      %p144 = por %p142, %p143
      %p145 = scmp.ne.s32.totalorder %s137, %s140
      %p146 = scmp.eq.s32.totalorder %s17, 0
      %p147 = por %p145, %p146
      %p148 = scmp.ne.s32.totalorder %s137, %s140
      %p149 = scmp.eq.s32.totalorder %s22, 1
      %p150 = por %p148, %p149
      %p151 = scmp.ne.s32.totalorder %s140, %s141
      %p152 = scmp.eq.s32.totalorder %s22, 0
      %p153 = por %p151, %p152
      %p154 = scmp.ne.s32.totalorder %s140, %s141
      %p155 = scmp.eq.s32.totalorder %s23, 1
      %p156 = por %p154, %p155
      %p158 = scmp.ne.s32.totalorder %s141, %s157
      %p159 = scmp.eq.s32.totalorder %s23, 0
      %p160 = por %p158, %p159
      %p161 = scmp.le.s32.totalorder 1, %s17
      %p162 = scmp.lt.s32.totalorder %s17, 3
      %p163 = pnand %p161, %p162
      %p164 = pneg %p163
      // Predicated region
      $region9: #{tpu_custom_call.1} parent=5 // pred_check
        _
      $region10: #{tpu_custom_call.1} parent=5 // pred_check_branch
        %166 = sbr.rel (%p163) target = $region12
      $region11: #{tpu_custom_call.1} parent=5 // pred_region
        %s167 = ssub.s32 %s17, 1
        // Predicated region
        $region13: #{tpu_custom_call.1} parent=11 // pred_check
          %p168 = pneg %p64
        $region14: #{tpu_custom_call.1} parent=11 // pred_check_branch
          %170 = sbr.rel (%p168) target = $region16
        $region15: #{tpu_custom_call.1} parent=11 // pred_region
          _
        $region16: #{tpu_custom_call.1} parent=11 // pred_fallthru
          _
        // Predicated region
        $region17: #{tpu_custom_call.1} parent=11 // pred_check
          %p171 = pneg %p85
        $region18: #{tpu_custom_call.1} parent=11 // pred_check_branch
          %173 = sbr.rel (%p171) target = $region20
        $region19: #{tpu_custom_call.1} parent=11 // pred_region
          _
        $region20: #{tpu_custom_call.1} parent=11 // pred_fallthru
          _
        // Predicated region
        $region21: #{tpu_custom_call.1} parent=11 // pred_check
          %p174 = pneg %p106
        $region22: #{tpu_custom_call.1} parent=11 // pred_check_branch
          %176 = sbr.rel (%p174) target = $region24
        $region23: #{tpu_custom_call.1} parent=11 // pred_region
          _
        $region24: #{tpu_custom_call.1} parent=11 // pred_fallthru
          _
        // Predicated region
        $region25: #{tpu_custom_call.1} parent=11 // pred_check
          %p177 = pneg %p127
        $region26: #{tpu_custom_call.1} parent=11 // pred_check_branch
          %179 = sbr.rel (%p177) target = $region28
        $region27: #{tpu_custom_call.1} parent=11 // pred_region
          _
        $region28: #{tpu_custom_call.1} parent=11 // pred_fallthru
          _
      $region12: #{tpu_custom_call.1} parent=5 // pred_fallthru
        _
      %p180 = scmp.lt.s32.totalorder %s17, 2
      // Predicated region
      $region29: #{tpu_custom_call.1} parent=5 // pred_check
        %p181 = pneg %p180
      $region30: #{tpu_custom_call.1} parent=5 // pred_check_branch
        %183 = sbr.rel (%p181) target = $region32
      $region31: #{tpu_custom_call.1} parent=5 // pred_region
        // Predicated region
        $region33: #{tpu_custom_call.1} parent=31 // pred_check
          %p184 = pneg %p37
        $region34: #{tpu_custom_call.1} parent=31 // pred_check_branch
          %186 = sbr.rel (%p184) target = $region36
        $region35: #{tpu_custom_call.1} parent=31 // pred_region
          %s187 = sand.u32 %s27, 1
          %s188 = scalar_lea.sflag [#allocation3], %s187
          %s189 = sand.u32 %s27, 1
          %s190 = smul.addr %s189, 64
          %s191 = scalar_lea.vmem [#allocation2], %s190
          %s192 = smul.u32 8, %s17
          %s194 = ssub.s32 1024, 1024
          %195 = vsyncadd %s188, %s194
          %s196 = smul.addr %s192, 2
          %s197 = smul.addr %s196, 64
          %s198 = scalar_lea.hbm %s0, %s197
          %s199 = sshll.u32 %s191, 4
          %s200 = int_to_ptr.vmem [resolvable:$true] %s199
          %205 = dma.hbm_to_vmem [thread:$0]  %s198, 1024, %s200, %s188, 64, 64, 4
        $region36: #{tpu_custom_call.1} parent=31 // pred_fallthru
          _
      $region32: #{tpu_custom_call.1} parent=5 // pred_fallthru
        _
      %p206 = scmp.le.s32.totalorder 1, %s17
      %p207 = scmp.lt.s32.totalorder %s17, 3
      %p208 = pnand %p206, %p207
      %p209 = pneg %p208
      // Predicated region
      $region37: #{tpu_custom_call.1} parent=5 // pred_check
        _
      $region38: #{tpu_custom_call.1} parent=5 // pred_check_branch
        %211 = sbr.rel (%p208) target = $region40
      $region39: #{tpu_custom_call.1} parent=5 // pred_region
        %s212 = ssub.s32 %s17, 1
        %s213 = sand.u32 %s30, 1
        %s214 = scalar_lea.sflag [#allocation3], %s213
        %s215 = sand.u32 %s30, 1
        %s216 = smul.addr %s215, 64
        %s217 = scalar_lea.vmem [#allocation2], %s216
        // Predicated region
        $region41: #{tpu_custom_call.1} parent=39 // pred_check
          %p218 = pneg %p43
        $region42: #{tpu_custom_call.1} parent=39 // pred_check_branch
          %220 = sbr.rel (%p218) target = $region44
        $region43: #{tpu_custom_call.1} parent=39 // pred_region
          %221 = dma.done %s214, 1024
        $region44: #{tpu_custom_call.1} parent=39 // pred_fallthru
          _
        %s222 = sand.u32 %s30, 1
        %s223 = scalar_lea.sflag [#allocation3], %s222
        %s224 = sand.u32 %s30, 1
        %s225 = smul.addr %s224, 64
        %s226 = scalar_lea.vmem [#allocation2], %s225
        %p227 = pneg %p43
        %p228 = pneg %p40
        %p229 = pneg %p64
        %p230 = pneg %p61
        %p231 = pneg %p85
        %p232 = pneg %p82
        %p233 = pneg %p106
        %p234 = pneg %p103
        %p235 = pneg %p127
        %p236 = pneg %p124
        %p237 = pneg %p153
        %p238 = pneg %p150
        %s239 = sand.u32 %s140, 1
        %s240 = scalar_lea.sflag [#allocation4], %s239
        %s241 = sand.u32 %s140, 1
        %s242 = smul.addr %s241, 8
        %s243 = scalar_lea.vmem [#allocation5], %s242
        %s244 = smul.u32 8, %s22
        %v245 = vld [vmem:[%s217] sm:$0xf]
        %v246 = vld [vmem:[%s217 + $0x4] sm:$0xf]
        %v247 = vld [vmem:[%s217 + $0x8] sm:$0xf]
        %v248 = vld [vmem:[%s217 + $0xc] sm:$0xf]
        %v249 = vld [vmem:[%s217 + $0x10] sm:$0xf]
        %v250 = vld [vmem:[%s217 + $0x14] sm:$0xf]
        %v251 = vld [vmem:[%s217 + $0x18] sm:$0xf]
        %v252 = vld [vmem:[%s217 + $0x1c] sm:$0xf]
        %v253 = vld [vmem:[%s217 + $0x20] sm:$0xf]
        %v254 = vld [vmem:[%s217 + $0x24] sm:$0xf]
        %v255 = vld [vmem:[%s217 + $0x28] sm:$0xf]
        %v256 = vld [vmem:[%s217 + $0x2c] sm:$0xf]
        %v257 = vld [vmem:[%s217 + $0x30] sm:$0xf]
        %v258 = vld [vmem:[%s217 + $0x34] sm:$0xf]
        %v259 = vld [vmem:[%s217 + $0x38] sm:$0xf]
        %v260 = vld [vmem:[%s217 + $0x3c] sm:$0xf]
        %v261 = vunpack.c.l.bf16 %v245
        %v262 = vunpack.c.l.bf16 %v246
        %v263 = vunpack.c.l.bf16 %v247
        %v264 = vunpack.c.l.bf16 %v248
        %v265 = vunpack.c.l.bf16 %v249
        %v266 = vunpack.c.l.bf16 %v250
        %v267 = vunpack.c.l.bf16 %v251
        %v268 = vunpack.c.l.bf16 %v252
        %v269 = vunpack.c.l.bf16 %v253
        %v270 = vunpack.c.l.bf16 %v254
        %v271 = vunpack.c.l.bf16 %v255
        %v272 = vunpack.c.l.bf16 %v256
        %v273 = vunpack.c.l.bf16 %v257
        %v274 = vunpack.c.l.bf16 %v258
        %v275 = vunpack.c.l.bf16 %v259
        %v276 = vunpack.c.l.bf16 %v260
        %v277 = vld [vmem:[%s1] sm:$0xff]
        %v278 = vld [vmem:[%s1 + $0x8] sm:$0xff]
        %280 = vset.pattern.permute.xlu0 0
        %281 = vperm.xlu0 %280, %v277
        %v282 = vpop.permute.xlu0 %281
        %285 = vset.pattern.permute.xlu0 0
        %286 = vperm.xlu0 %285, %v278
        %v287 = vpop.permute.xlu0 %286
        %v289 = vmul.f32 %v261, %v282
        %v290 = vmul.f32 %v262, %v287
        %v291 = vmul.f32 %v263, %v282
        %v292 = vmul.f32 %v264, %v287
        %v293 = vmul.f32 %v265, %v282
        %v294 = vmul.f32 %v266, %v287
        %v295 = vmul.f32 %v267, %v282
        %v296 = vmul.f32 %v268, %v287
        %v297 = vmul.f32 %v269, %v282
        %v298 = vmul.f32 %v270, %v287
        %v299 = vmul.f32 %v271, %v282
        %v300 = vmul.f32 %v272, %v287
        %v301 = vmul.f32 %v273, %v282
        %v302 = vmul.f32 %v274, %v287
        %v303 = vmul.f32 %v275, %v282
        %v304 = vmul.f32 %v276, %v287
        %v305 = vld [vmem:[%s2] sm:$0xff]
        %v306 = vld [vmem:[%s2 + $0x8] sm:$0xff]
        %308 = vset.pattern.permute.xlu0 0
        %309 = vperm.xlu0 %308, %v305
        %v310 = vpop.permute.xlu0 %309
        %313 = vset.pattern.permute.xlu0 0
        %314 = vperm.xlu0 %313, %v306
        %v315 = vpop.permute.xlu0 %314
        %v317 = vadd.f32 %v289, %v310
        %v318 = vadd.f32 %v290, %v315
        %v319 = vadd.f32 %v291, %v310
        %v320 = vadd.f32 %v292, %v315
        %v321 = vadd.f32 %v293, %v310
        %v322 = vadd.f32 %v294, %v315
        %v323 = vadd.f32 %v295, %v310
        %v324 = vadd.f32 %v296, %v315
        %v325 = vadd.f32 %v297, %v310
        %v326 = vadd.f32 %v298, %v315
        %v327 = vadd.f32 %v299, %v310
        %v328 = vadd.f32 %v300, %v315
        %v329 = vadd.f32 %v301, %v310
        %v330 = vadd.f32 %v302, %v315
        %v331 = vadd.f32 %v303, %v310
        %v332 = vadd.f32 %v304, %v315
        %v333 = vmax.f32 %v317, 0.0
        %v334 = vmax.f32 %v318, 0.0
        %v335 = vmax.f32 %v319, 0.0
        %v336 = vmax.f32 %v320, 0.0
        %v337 = vmax.f32 %v321, 0.0
        %v338 = vmax.f32 %v322, 0.0
        %v339 = vmax.f32 %v323, 0.0
        %v340 = vmax.f32 %v324, 0.0
        %v341 = vmax.f32 %v325, 0.0
        %v342 = vmax.f32 %v326, 0.0
        %v343 = vmax.f32 %v327, 0.0
        %v344 = vmax.f32 %v328, 0.0
        %v345 = vmax.f32 %v329, 0.0
        %v346 = vmax.f32 %v330, 0.0
        %v347 = vmax.f32 %v331, 0.0
        %v348 = vmax.f32 %v332, 0.0
        %vm349 = vcmask 523264
        %v350 = vsel %vm349, %v333, 0.0
        %351 = vadd.xlane.f32.xlu0 %v350
        %v352 = vpop.xlane.xlu0 %351
        %v353 = vsel %vm349, %v334, 0.0
        %354 = vadd.xlane.f32.xlu0 %v353
        %v355 = vpop.xlane.xlu0 %354
        %v356 = vsel %vm349, %v335, 0.0
        %357 = vadd.xlane.f32.xlu0 %v356
        %v358 = vpop.xlane.xlu0 %357
        %v359 = vsel %vm349, %v336, 0.0
        %360 = vadd.xlane.f32.xlu0 %v359
        %v361 = vpop.xlane.xlu0 %360
        %v362 = vsel %vm349, %v337, 0.0
        %363 = vadd.xlane.f32.xlu0 %v362
        %v364 = vpop.xlane.xlu0 %363
        %v365 = vsel %vm349, %v338, 0.0
        %366 = vadd.xlane.f32.xlu0 %v365
        %v367 = vpop.xlane.xlu0 %366
        %v368 = vsel %vm349, %v339, 0.0
        %369 = vadd.xlane.f32.xlu0 %v368
        %v370 = vpop.xlane.xlu0 %369
        %v371 = vsel %vm349, %v340, 0.0
        %372 = vadd.xlane.f32.xlu0 %v371
        %v373 = vpop.xlane.xlu0 %372
        %v374 = vsel %vm349, %v341, 0.0
        %375 = vadd.xlane.f32.xlu0 %v374
        %v376 = vpop.xlane.xlu0 %375
        %v377 = vsel %vm349, %v342, 0.0
        %378 = vadd.xlane.f32.xlu0 %v377
        %v379 = vpop.xlane.xlu0 %378
        %v380 = vsel %vm349, %v343, 0.0
        %381 = vadd.xlane.f32.xlu0 %v380
        %v382 = vpop.xlane.xlu0 %381
        %v383 = vsel %vm349, %v344, 0.0
        %384 = vadd.xlane.f32.xlu0 %v383
        %v385 = vpop.xlane.xlu0 %384
        %v386 = vsel %vm349, %v345, 0.0
        %387 = vadd.xlane.f32.xlu0 %v386
        %v388 = vpop.xlane.xlu0 %387
        %v389 = vsel %vm349, %v346, 0.0
        %390 = vadd.xlane.f32.xlu0 %v389
        %v391 = vpop.xlane.xlu0 %390
        %v392 = vsel %vm349, %v347, 0.0
        %393 = vadd.xlane.f32.xlu0 %v392
        %v394 = vpop.xlane.xlu0 %393
        %v395 = vsel %vm349, %v348, 0.0
        %396 = vadd.xlane.f32.xlu0 %v395
        %v397 = vpop.xlane.xlu0 %396
        %v398 = vld [vmem:[%s3] sm:$0xff]
        %v399 = vld [vmem:[%s3 + $0x8] sm:$0xff]
        %v400 = vld [vmem:[%s4] sm:$0x1]
        %v402 = vlaneseq
        %v403 = vshrl.u32 %v402, 7
        %v404 = vsub.s32 0, %v403
        %v405 = vrot.slane %v400, %v404
        %v423 = vlaneseq
        %v424 = vand.u32 %v423, 127
        %v425 = vlaneseq
        %v426 = vshrl.u32 %v425, 7
        %v427 = vsub.s32 %v424, %v426
        %v428 = vrot.slane %v352, %v427
        %v429 = vadd.s32 %v424, 4294967288
        %v430 = vlaneseq
        %v431 = vshrl.u32 %v430, 7
        %v432 = vsub.s32 %v429, %v431
        %v433 = vrot.slane %v355, %v432
        %vm434 = vcmask 130112
        %v435 = vsel %vm434, %v433, %v428
        %v436 = vlaneseq
        %v437 = vshrl.u32 %v436, 7
        %v438 = vsub.s32 %v424, %v437
        %v439 = vrot.slane %v358, %v438
        %v440 = vlaneseq
        %v441 = vshrl.u32 %v440, 7
        %v442 = vsub.s32 %v429, %v441
        %v443 = vrot.slane %v361, %v442
        %v444 = vsel %vm434, %v443, %v439
        %v445 = vlaneseq
        %v446 = vshrl.u32 %v445, 7
        %v447 = vsub.s32 %v424, %v446
        %v448 = vrot.slane %v364, %v447
        %v449 = vlaneseq
        %v450 = vshrl.u32 %v449, 7
        %v451 = vsub.s32 %v429, %v450
        %v452 = vrot.slane %v367, %v451
        %v453 = vsel %vm434, %v452, %v448
        %v454 = vlaneseq
        %v455 = vshrl.u32 %v454, 7
        %v456 = vsub.s32 %v424, %v455
        %v457 = vrot.slane %v370, %v456
        %v458 = vlaneseq
        %v459 = vshrl.u32 %v458, 7
        %v460 = vsub.s32 %v429, %v459
        %v461 = vrot.slane %v373, %v460
        %v462 = vsel %vm434, %v461, %v457
        %v463 = vlaneseq
        %v464 = vshrl.u32 %v463, 7
        %v465 = vsub.s32 %v424, %v464
        %v466 = vrot.slane %v376, %v465
        %v467 = vlaneseq
        %v468 = vshrl.u32 %v467, 7
        %v469 = vsub.s32 %v429, %v468
        %v470 = vrot.slane %v379, %v469
        %v471 = vsel %vm434, %v470, %v466
        %v472 = vlaneseq
        %v473 = vshrl.u32 %v472, 7
        %v474 = vsub.s32 %v424, %v473
        %v475 = vrot.slane %v382, %v474
        %v476 = vlaneseq
        %v477 = vshrl.u32 %v476, 7
        %v478 = vsub.s32 %v429, %v477
        %v479 = vrot.slane %v385, %v478
        %v480 = vsel %vm434, %v479, %v475
        %v481 = vlaneseq
        %v482 = vshrl.u32 %v481, 7
        %v483 = vsub.s32 %v424, %v482
        %v484 = vrot.slane %v388, %v483
        %v485 = vlaneseq
        %v486 = vshrl.u32 %v485, 7
        %v487 = vsub.s32 %v429, %v486
        %v488 = vrot.slane %v391, %v487
        %v489 = vsel %vm434, %v488, %v484
        %v490 = vlaneseq
        %v491 = vshrl.u32 %v490, 7
        %v492 = vsub.s32 %v424, %v491
        %v493 = vrot.slane %v394, %v492
        %v494 = vlaneseq
        %v495 = vshrl.u32 %v494, 7
        %v496 = vsub.s32 %v429, %v495
        %v497 = vrot.slane %v397, %v496
        %v498 = vsel %vm434, %v497, %v493
        %vm499 = vcmask 1041409
        %v500 = vsel %vm499, %v444, %v435
        %vm501 = vcmask 1042434
        %v502 = vsel %vm501, %v453, %v500
        %vm503 = vcmask 1043459
        %v504 = vsel %vm503, %v462, %v502
        %vm505 = vcmask 1044484
        %v506 = vsel %vm505, %v471, %v504
        %vm507 = vcmask 1045509
        %v508 = vsel %vm507, %v480, %v506
        %vm509 = vcmask 1046534
        %v510 = vsel %vm509, %v489, %v508
        %vm511 = vcmask 1047559
        %v512 = vsel %vm511, %v498, %v510
        %vm513 = vcmask 130048
        %v514 = vsel %vm513, %v512, 0
        %516 = vmatprep.subr.mxu0 0.0
        %517 = vmatpush1.msra.mxu0 0.0
        %518 = vmatprep.subr.mxu0 0.0
        %519 = vmatpush1.msra.mxu0 0.0
        %520 = vmatprep.subr.mxu0 0.0
        %521 = vmatpush1.msra.mxu0 0.0
        %522 = vmatprep.subr.mxu0 0.0
        %523 = vmatpush1.msra.mxu0 0.0
        %524 = vmatprep.subr.mxu0 0.0
        %525 = vmatpush1.msra.mxu0 0.0
        %526 = vmatprep.subr.mxu0 0.0
        %527 = vmatpush1.msra.mxu0 0.0
        %528 = vmatprep.subr.mxu0 0.0
        %529 = vmatpush1.msra.mxu0 0.0
        %530 = vmatprep.subr.mxu0 0.0
        %531 = vmatpush1.msra.mxu0 0.0
        %532 = vmatprep.subr.mxu0 0.0
        %533 = vmatpush1.msra.mxu0 0.0
        %534 = vmatprep.subr.mxu0 0.0
        %535 = vmatpush1.msra.mxu0 0.0
        %536 = vmatprep.subr.mxu0 0.0
        %537 = vmatpush1.msra.mxu0 0.0
        %538 = vmatprep.subr.mxu0 0.0
        %539 = vmatpush1.msra.mxu0 0.0
        %540 = vmatprep.subr.mxu0 0.0
        %541 = vmatpush1.msra.mxu0 0.0
        %542 = vmatprep.subr.mxu0 0.0
        %543 = vmatpush1.msra.mxu0 0.0
        %544 = vmatprep.subr.mxu0 0.0
        %545 = vmatpush1.msra.mxu0 %v399
        %546 = vmatprep.subr.mxu0 0.0
        %547 = vmatpush1.msra.mxu0 %v398
        %548 = vmatprep.subr.mxu0 0.0
        %549 = vmatpush2.msra.mxu0 0.0
        %550 = vmatprep.subr.mxu0 0.0
        %551 = vmatpush2.msra.mxu0 0.0
        %552 = vmatprep.subr.mxu0 0.0
        %553 = vmatpush2.msra.mxu0 0.0
        %554 = vmatprep.subr.mxu0 0.0
        %555 = vmatpush2.msra.mxu0 0.0
        %556 = vmatprep.subr.mxu0 0.0
        %557 = vmatpush2.msra.mxu0 0.0
        %558 = vmatprep.subr.mxu0 0.0
        %559 = vmatpush2.msra.mxu0 0.0
        %560 = vmatprep.subr.mxu0 0.0
        %561 = vmatpush2.msra.mxu0 0.0
        %562 = vmatprep.subr.mxu0 0.0
        %563 = vmatpush2.msra.mxu0 0.0
        %564 = vmatprep.subr.mxu0 0.0
        %565 = vmatpush2.msra.mxu0 0.0
        %566 = vmatprep.subr.mxu0 0.0
        %567 = vmatpush2.msra.mxu0 0.0
        %568 = vmatprep.subr.mxu0 0.0
        %569 = vmatpush2.msra.mxu0 0.0
        %570 = vmatprep.subr.mxu0 0.0
        %571 = vmatpush2.msra.mxu0 0.0
        %572 = vmatprep.subr.mxu0 0.0
        %573 = vmatpush2.msra.mxu0 0.0
        %574 = vmatprep.subr.mxu0 0.0
        %575 = vmatpush2.msra.mxu0 0.0
        %576 = vmatprep.subr.mxu0 0.0
        %577 = vmatpush2.msra.mxu0 0.0
        %578 = vmatprep.subr.mxu0 0.0
        %579 = vmatpush2.msra.mxu0 0.0
        %580 = vmatprep.mubr.f32.mxu0 0.0
        %581 = vmatmul.mubr.f32.gmra.mxu0 %v514
        %v582 = vpop.f32.mrf.mxu0
        %v583 = vadd.f32 %v405, %v582
        %v584 = vpop.f32.mrf.mxu0
        %585 = vdwg.mxu0
        %586 = vst [vmem:[%s243] sm:$0xff] %v583
        %s587 = sand.u32 %s140, 1
        %s588 = scalar_lea.sflag [#allocation4], %s587
        %s589 = sand.u32 %s140, 1
        %s590 = smul.addr %s589, 8
        %s591 = scalar_lea.vmem [#allocation5], %s590
        // Predicated region
        $region45: #{tpu_custom_call.1} parent=39 // pred_check
          %p592 = pneg %p150
        $region46: #{tpu_custom_call.1} parent=39 // pred_check_branch
          %594 = sbr.rel (%p592) target = $region48
        $region47: #{tpu_custom_call.1} parent=39 // pred_region
          %s596 = ssub.s32 128, 128
          %597 = vsyncadd %s588, %s596
          %s598 = smul.addr %s22, 128
          %s599 = scalar_lea.hbm %s5, %s598
          %s601 = sshll.u32 %s591, 4
          %s602 = int_to_ptr.vmem [resolvable:$true] %s601
          %604 = dma.vmem_to_hbm [thread:$0]  %s602, 128, %s599, %s588
        $region48: #{tpu_custom_call.1} parent=39 // pred_fallthru
          _
      $region40: #{tpu_custom_call.1} parent=5 // pred_fallthru
        _
      %p605 = scmp.le.s32.totalorder 2, %s17
      // Predicated region
      $region49: #{tpu_custom_call.1} parent=5 // pred_check
        %p606 = pneg %p605
      $region50: #{tpu_custom_call.1} parent=5 // pred_check_branch
        %608 = sbr.rel (%p606) target = $region52
      $region51: #{tpu_custom_call.1} parent=5 // pred_region
        %s609 = ssub.s32 %s17, 2
        // Predicated region
        $region53: #{tpu_custom_call.1} parent=51 // pred_check
          %p610 = pneg %p156
        $region54: #{tpu_custom_call.1} parent=51 // pred_check_branch
          %612 = sbr.rel (%p610) target = $region56
        $region55: #{tpu_custom_call.1} parent=51 // pred_region
          %s613 = sand.u32 %s141, 1
          %s614 = scalar_lea.sflag [#allocation4], %s613
          %s615 = sand.u32 %s141, 1
          %s616 = smul.addr %s615, 8
          %s617 = scalar_lea.vmem [#allocation5], %s616
          %618 = dma.done %s614, 128
        $region56: #{tpu_custom_call.1} parent=51 // pred_fallthru
          _
      $region52: #{tpu_custom_call.1} parent=5 // pred_fallthru
        _
    $region6: #{tpu_custom_call.1} parent=1 // loop_footer
      %s21 = sadd.s32 1, %s17
    $region7: #{tpu_custom_call.1} parent=1 // loop_footer_branch
      %16 = sbr.rel target = $region3
    $region8: #{tpu_custom_call.1} parent=1 // loop_exit
      _
    %619 = vsyncpa [#allocation3], 1
    %s620 = scalar_lea.sflag [#allocation3], 1
    %621 = vsyncpa %s620, 1
    %622 = vsyncpa [#allocation4], 1
    %s623 = scalar_lea.sflag [#allocation4], 1
    %624 = vsyncpa %s623, 1

</llo_original>
